<compile_context>
chip_gen: v6e
topology: v6e:2x2x1
jax: 0.10.0
libtpu: 0.0.40
codegen_flags: <defaults>
</compile_context>

<pallas_src>
import math

import jax
import jax.numpy as jnp
from jax.experimental import pallas as pl
from jax.experimental.pallas import tpu as pltpu

_LANE = 128


def _round_up(n, m):
    return ((n + m - 1) // m) * m


def rnn_recurrence_kernel(len_ref, xp_ref, whh_ref, out_ref, h_ref):
    """One grid step = one (batch block, time block); batch lives on the LANE axis.

    len_ref : (1, BB)      int32  sequence lengths for this batch block (lane-aligned)
    xp_ref  : (TT, H, BB)  f32    precomputed W_ih x_t + b_ih + b_hh, batch-on-lanes
    whh_ref : (H, H)       f32    W_hh (untransposed: pre_t = xp_t + W_hh @ h_{t-1})
    out_ref : (TT, H, BB)  f32    masked RNN output (padding value -1), batch-on-lanes
    h_ref   : (H, BB)      f32    hidden-state carry (VMEM scratch)
    """
    tblk = pl.program_id(1)

    # h_0 = 0 at the start of every batch block's time sweep
    @pl.when(tblk == 0)
    def _():
        h_ref[...] = jnp.zeros_like(h_ref)

    tt_block = xp_ref.shape[0]
    t_base = tblk * tt_block
    lens = len_ref[...]          # (1, BB) int32, broadcasts over the H sublane axis
    whh = whh_ref[...]           # (H, H), loaded once, reused across the unrolled loop

    def step(tt, h):
        # Elman cell, batch on lanes: (H,H) @ (H,BB) keeps the MXU N dim lane-dense.
        pre = xp_ref[tt] + jnp.dot(whh, h, preferred_element_type=jnp.float32)
        h_new = jnp.tanh(pre)                                      # EUP
        valid = (t_base + tt) < lens                               # (1, BB) bool
        out_ref[tt] = jnp.where(valid, h_new, jnp.float32(-1.0))   # lane-dense store
        return jnp.where(valid, h_new, h)                          # freeze h past length[b]

    # Partial unroll once the time block is long; full unroll for short blocks.
    unroll = 8 if tt_block >= 64 else True
    h_ref[...] = jax.lax.fori_loop(0, tt_block, step, h_ref[...], unroll=unroll)


def my_rnn_forward(x, lengths, params, *, time_block=64, batch_block=256,
                   use_bf16_matmul=False):
    """x: (B, T, I) float32 (batch_first like PyTorch), lengths: (B,) int32.

    Returns (out_fix, out_state) with shapes (B, T, 2) / (B, T, 3), matching the
    PyTorch module's pad_packed_sequence(padding_value=-1) followed by the two heads.
    """
    B, T, I = x.shape
    H = params["w_hh"].shape[0]
    assert batch_block % _LANE == 0, "batch_block must be a multiple of 128 lanes"

    # ---- tiling: batch lives on the 128-wide lane axis ----------------------
    B_pad = _round_up(B, _LANE)
    BB = min(batch_block, B_pad)
    # prefer >= 2 batch blocks so the "parallel" axis can shard across v7x's 2 TCs
    if B_pad // BB < 2 and B_pad >= 2 * _LANE:
        BB = max(_LANE, ((B_pad // 2) // _LANE) * _LANE)
    B_pad = _round_up(B_pad, BB)
    TT = min(time_block, T)
    T_pad = _round_up(T, TT)

    # ---- hoisted, non-recurrent input projection (plain JAX, >99% of FLOPs) --
    # 'bti,hi->bth' contracts the LAST axis of x, so the big (B, T, I) operand is
    # never transposed; only the small (B, T, H) result is re-laid out below.
    w_ih = params["w_ih"]                                            # (H, I)
    b_rnn = (params["b_ih"] + params["b_hh"]).astype(jnp.float32)    # (H,)
    if use_bf16_matmul:
        # bf16 operands, f32 accumulation (v6e/v7x): the projection is HBM-bound,
        # so ideally the caller keeps x resident in bf16 in HBM.
        xp_bth = jnp.einsum("bti,hi->bth", x.astype(jnp.bfloat16),
                            w_ih.astype(jnp.bfloat16),
                            preferred_element_type=jnp.float32)
    else:
        xp_bth = jnp.einsum("bti,hi->bth", x.astype(jnp.float32),
                            w_ih.astype(jnp.float32),
                            preferred_element_type=jnp.float32)
    xp_bth = xp_bth + b_rnn[None, None, :]                           # (B, T, H)

    # time-major, batch-on-lanes layout for the kernel; pad batch/time AFTER the
    # projection so padded rows never cost projection FLOPs.
    xp_thb = jnp.transpose(xp_bth, (1, 2, 0))                        # (T, H, B), small
    xp_thb = jnp.zeros((T_pad, H, B_pad), jnp.float32).at[:T, :, :B].set(xp_thb)

    len_p = jnp.zeros((1, B_pad), jnp.int32).at[0, :B].set(lengths.astype(jnp.int32))
    w_hh = params["w_hh"].astype(jnp.float32)                        # (H, H), untransposed

    NB = B_pad // BB
    NT = T_pad // TT

    grid_spec = pltpu.PrefetchScalarGridSpec(
        num_scalar_prefetch=0,
        grid=(NB, NT),
        in_specs=[
            pl.BlockSpec((1, BB), lambda b, t: (0, b)),              # lengths (lane-aligned)
            pl.BlockSpec((TT, H, BB), lambda b, t: (t, 0, b)),       # xp, batch-on-lanes
            pl.BlockSpec((H, H), lambda b, t: (0, 0)),               # W_hh (resident)
        ],
        out_specs=pl.BlockSpec((TT, H, BB), lambda b, t: (t, 0, b)),
        scratch_shapes=[pltpu.VMEM((H, BB), jnp.float32)],           # hidden-state carry
    )

    hseq_thb = pl.pallas_call(
        rnn_recurrence_kernel,
        out_shape=jax.ShapeDtypeStruct((T_pad, H, B_pad), jnp.float32),
        grid_spec=grid_spec,
        compiler_params=pltpu.CompilerParams(
            # batch blocks are independent -> "parallel" (megacore sharding on v7x);
            # time carries the recurrence  -> "arbitrary" (sequential).
            dimension_semantics=("parallel", "arbitrary"),
            # above v5e/v6e scoped defaults (16/32 MiB); headroom under v7x's 64 MiB.
            vmem_limit_bytes=48 * 1024 * 1024,
        ),
    )(len_p, xp_thb, w_hh)

    # fc heads fused into one (H, 5) matmul, applied to the time-major hidden sequence
    # (already -1-padded, exactly like the PyTorch forward); only the tiny (T, B, 5)
    # result is transposed back to batch-first instead of the full hidden sequence.
    w_head = jnp.concatenate([params["w_fix"].T, params["w_state"].T], axis=1)  # (H, 5)
    b_head = jnp.concatenate([params["b_fix"], params["b_state"]])              # (5,)
    heads_tbf = jnp.einsum("thb,hf->tbf", hseq_thb, w_head,
                           preferred_element_type=jnp.float32)                  # (T_pad, B_pad, 5)
    heads = jnp.transpose(heads_tbf, (1, 0, 2))[:B, :T] + b_head                # (B, T, 5)
    return heads[..., :2], heads[..., 2:5]


def ref_forward(x, lengths, params):
    """Pure-JAX reference reproducing the packed-RNN + fc forward."""
    B, T, I = x.shape
    H = params["w_hh"].shape[0]
    h = jnp.zeros((B, H), jnp.float32)
    outs = []
    for t in range(T):
        pre = (x[:, t, :] @ params["w_ih"].T + params["b_ih"]
               + h @ params["w_hh"].T + params["b_hh"])
        h_new = jnp.tanh(pre)
        valid = (t < lengths)[:, None]
        h = jnp.where(valid, h_new, h)
        outs.append(jnp.where(valid, h_new, -1.0))
    out = jnp.stack(outs, axis=1)                          # (B, T, H), padded with -1
    out_fix = out @ params["w_fix"].T + params["b_fix"]
    out_state = out @ params["w_state"].T + params["b_state"]
    return out_fix, out_state


if __name__ == "__main__":
    # small stand-in shapes for (input_size=10000, hidden_size=20)
    B, T, I, H = 2, 8, 64, 32

    key = jax.random.PRNGKey(0)
    ks = jax.random.split(key, 9)
    bound = 1.0 / math.sqrt(H)
    params = {
        "w_ih": jax.random.uniform(ks[0], (H, I), jnp.float32, -bound, bound),
        "w_hh": jax.random.uniform(ks[1], (H, H), jnp.float32, -bound, bound),
        "b_ih": jax.random.uniform(ks[2], (H,), jnp.float32, -bound, bound),
        "b_hh": jax.random.uniform(ks[3], (H,), jnp.float32, -bound, bound),
        "w_fix": jax.random.uniform(ks[4], (2, H), jnp.float32, -bound, bound),
        "b_fix": jax.random.uniform(ks[5], (2,), jnp.float32, -bound, bound),
        "w_state": jax.random.uniform(ks[6], (3, H), jnp.float32, -bound, bound),
        "b_state": jax.random.uniform(ks[7], (3,), jnp.float32, -bound, bound),
    }

    x = jax.random.normal(ks[8], (B, T, I), jnp.float32)
    lengths_py = [8, 5]                      # sorted descending (enforce_sorted=True)
    lengths = jnp.array(lengths_py, dtype=jnp.int32)
    T_out = max(lengths_py)                  # pad_packed_sequence trims to max(length)

    ref_fix, ref_state = ref_forward(x, lengths, params)
    ref_fix, ref_state = ref_fix[:, :T_out], ref_state[:, :T_out]

    # f32 path: tight check against the pure-JAX reference
    out_fix, out_state = my_rnn_forward(x, lengths, params)
    out_fix = jax.block_until_ready(out_fix)[:, :T_out]
    out_state = jax.block_until_ready(out_state)[:, :T_out]
    assert out_fix.shape == (B, T_out, 2) and out_state.shape == (B, T_out, 3)
    assert jnp.allclose(out_fix, ref_fix, atol=1e-4, rtol=1e-4)
    assert jnp.allclose(out_state, ref_state, atol=1e-4, rtol=1e-4)

    # bf16-operand projection path (same Pallas kernel): looser tolerance
    bf_fix, bf_state = my_rnn_forward(x, lengths, params, use_bf16_matmul=True)
    bf_fix = jax.block_until_ready(bf_fix)[:, :T_out]
    bf_state = jax.block_until_ready(bf_state)[:, :T_out]
    assert jnp.allclose(bf_fix, ref_fix, atol=1e-1, rtol=1e-1)
    assert jnp.allclose(bf_state, ref_state, atol=1e-1, rtol=1e-1)

    print("KERNEL_OK")
</pallas_src>

<mosaic_0001>
module attributes {stable_mosaic.version = 11 : i64} {
  func.func @rnn_recurrence_kernel(%arg0: i32, %arg1: i32, %arg2: memref<1x128xi32, #tpu.memory_space<vmem>>, %arg3: memref<8x32x128xf32, #tpu.memory_space<vmem>>, %arg4: memref<32x32xf32, #tpu.memory_space<vmem>>, %arg5: memref<8x32x128xf32, #tpu.memory_space<vmem>>, %arg6: memref<32x128xf32, #tpu.memory_space<vmem>>) attributes {dimension_semantics = [#tpu.dimension_semantics<parallel>, #tpu.dimension_semantics<arbitrary>], iteration_bounds = array<i64: 1, 1>, scalar_prefetch = 0 : i64, scratch_operands = 1 : i64, tpu.core_type = #tpu.core_type<tc>, window_params = [{transform_indices = @transform_0, window_bounds = array<i64: 1, 128>}, {transform_indices = @transform_1, window_bounds = array<i64: 8, 32, 128>}, {pipeline_mode = #tpu.pipeline_mode<synchronous>, transform_indices = @transform_2, window_bounds = array<i64: 32, 32>}, {transform_indices = @transform_3, window_bounds = array<i64: 8, 32, 128>}]} {
    %c0_i32 = arith.constant 0 : i32
    %0 = arith.cmpi eq, %arg1, %c0_i32 : i32
    %1 = arith.extui %0 : i1 to i32
    %c0_i32_0 = arith.constant 0 : i32
    %2 = arith.cmpi ne, %1, %c0_i32_0 : i32
    scf.if %2 {
      %cst_57 = arith.constant 0.000000e+00 : f32
      %168 = vector.broadcast %cst_57 : f32 to vector<32x128xf32>
      %c0_58 = arith.constant 0 : index
      %c0_59 = arith.constant 0 : index
      %169 = vector.load %arg6[%c0_58, %c0_59] : memref<32x128xf32, #tpu.memory_space<vmem>>, vector<32x128xf32>
      tpu.vector_store %arg6[%c0_58, %c0_59], %168 {strides = array<i32>} : memref<32x128xf32, #tpu.memory_space<vmem>>, vector<32x128xf32>,
    } else {
    }
    %c8_i32 = arith.constant 8 : i32
    %3 = arith.muli %arg1, %c8_i32 : i32
    %c0 = arith.constant 0 : index
    %c0_1 = arith.constant 0 : index
    %4 = vector.load %arg2[%c0, %c0_1] : memref<1x128xi32, #tpu.memory_space<vmem>>, vector<1x128xi32>
    %c0_2 = arith.constant 0 : index
    %c0_3 = arith.constant 0 : index
    %5 = vector.load %arg4[%c0_2, %c0_3] : memref<32x32xf32, #tpu.memory_space<vmem>>, vector<32x32xf32>
    %c0_4 = arith.constant 0 : index
    %c0_5 = arith.constant 0 : index
    %6 = vector.load %arg6[%c0_4, %c0_5] : memref<32x128xf32, #tpu.memory_space<vmem>>, vector<32x128xf32>
    %c0_i32_6 = arith.constant 0 : i32
    %7 = arith.index_cast %c0_i32_6 : i32 to index
    %c0_7 = arith.constant 0 : index
    %c0_8 = arith.constant 0 : index
    %8 = vector.load %arg3[%7, %c0_7, %c0_8] : memref<8x32x128xf32, #tpu.memory_space<vmem>>, vector<1x32x128xf32>
    %9 = vector.shape_cast %8 : vector<1x32x128xf32> to vector<32x128xf32>
    %cst = arith.constant dense<0.000000e+00> : vector<32x128xf32>
    %10 = tpu.matmul %5, %6, %cst {dimension_numbers = #tpu.dot_dimension_numbers<[1], [0], [0], [1], [0, 0, 1, 1], [], []>} : vector<32x32xf32>, vector<32x128xf32>, vector<32x128xf32> -> vector<32x128xf32>
    %11 = arith.addf %9, %10 : vector<32x128xf32>
    %12 = math.tanh %11 : vector<32x128xf32>
    %13 = arith.addi %3, %c0_i32_6 : i32
    %14 = vector.broadcast %13 : i32 to vector<1x128xi32>
    %15 = arith.cmpi slt, %14, %4 : vector<1x128xi32>
    %cst_9 = arith.constant -1.000000e+00 : f32
    %16 = vector.shape_cast %15 : vector<1x128xi1> to vector<1x128xi1>
    %17 = vector.broadcast %16 : vector<1x128xi1> to vector<32x128xi1>
    %18 = vector.broadcast %cst_9 : f32 to vector<32x128xf32>
    %19 = arith.select %17, %12, %18 : vector<32x128xi1>, vector<32x128xf32>
    %20 = arith.index_cast %c0_i32_6 : i32 to index
    %c0_10 = arith.constant 0 : index
    %c0_11 = arith.constant 0 : index
    %21 = vector.load %arg5[%20, %c0_10, %c0_11] : memref<8x32x128xf32, #tpu.memory_space<vmem>>, vector<1x32x128xf32>
    %22 = vector.shape_cast %21 : vector<1x32x128xf32> to vector<32x128xf32>
    %23 = vector.shape_cast %19 : vector<32x128xf32> to vector<1x32x128xf32>
    tpu.vector_store %arg5[%20, %c0_10, %c0_11], %23 {strides = array<i32>} : memref<8x32x128xf32, #tpu.memory_space<vmem>>, vector<1x32x128xf32>,
    %24 = vector.shape_cast %15 : vector<1x128xi1> to vector<1x128xi1>
    %25 = vector.broadcast %24 : vector<1x128xi1> to vector<32x128xi1>
    %26 = arith.select %25, %12, %6 : vector<32x128xi1>, vector<32x128xf32>
    %c1_i32 = arith.constant 1 : i32
    %27 = arith.index_cast %c1_i32 : i32 to index
    %c0_12 = arith.constant 0 : index
    %c0_13 = arith.constant 0 : index
    %28 = vector.load %arg3[%27, %c0_12, %c0_13] : memref<8x32x128xf32, #tpu.memory_space<vmem>>, vector<1x32x128xf32>
    %29 = vector.shape_cast %28 : vector<1x32x128xf32> to vector<32x128xf32>
    %cst_14 = arith.constant dense<0.000000e+00> : vector<32x128xf32>
    %30 = tpu.matmul %5, %26, %cst_14 {dimension_numbers = #tpu.dot_dimension_numbers<[1], [0], [0], [1], [0, 0, 1, 1], [], []>} : vector<32x32xf32>, vector<32x128xf32>, vector<32x128xf32> -> vector<32x128xf32>
    %31 = arith.addf %29, %30 : vector<32x128xf32>
    %32 = math.tanh %31 : vector<32x128xf32>
    %33 = arith.addi %3, %c1_i32 : i32
    %34 = vector.broadcast %33 : i32 to vector<1x128xi32>
    %35 = arith.cmpi slt, %34, %4 : vector<1x128xi32>
    %cst_15 = arith.constant -1.000000e+00 : f32
    %36 = vector.shape_cast %35 : vector<1x128xi1> to vector<1x128xi1>
    %37 = vector.broadcast %36 : vector<1x128xi1> to vector<32x128xi1>
    %38 = vector.broadcast %cst_15 : f32 to vector<32x128xf32>
    %39 = arith.select %37, %32, %38 : vector<32x128xi1>, vector<32x128xf32>
    %40 = arith.index_cast %c1_i32 : i32 to index
    %c0_16 = arith.constant 0 : index
    %c0_17 = arith.constant 0 : index
    %41 = vector.load %arg5[%40, %c0_16, %c0_17] : memref<8x32x128xf32, #tpu.memory_space<vmem>>, vector<1x32x128xf32>
    %42 = vector.shape_cast %41 : vector<1x32x128xf32> to vector<32x128xf32>
    %43 = vector.shape_cast %39 : vector<32x128xf32> to vector<1x32x128xf32>
    tpu.vector_store %arg5[%40, %c0_16, %c0_17], %43 {strides = array<i32>} : memref<8x32x128xf32, #tpu.memory_space<vmem>>, vector<1x32x128xf32>,
    %44 = vector.shape_cast %35 : vector<1x128xi1> to vector<1x128xi1>
    %45 = vector.broadcast %44 : vector<1x128xi1> to vector<32x128xi1>
    %46 = arith.select %45, %32, %26 : vector<32x128xi1>, vector<32x128xf32>
    %c2_i32 = arith.constant 2 : i32
    %47 = arith.index_cast %c2_i32 : i32 to index
    %c0_18 = arith.constant 0 : index
    %c0_19 = arith.constant 0 : index
    %48 = vector.load %arg3[%47, %c0_18, %c0_19] : memref<8x32x128xf32, #tpu.memory_space<vmem>>, vector<1x32x128xf32>
    %49 = vector.shape_cast %48 : vector<1x32x128xf32> to vector<32x128xf32>
    %cst_20 = arith.constant dense<0.000000e+00> : vector<32x128xf32>
    %50 = tpu.matmul %5, %46, %cst_20 {dimension_numbers = #tpu.dot_dimension_numbers<[1], [0], [0], [1], [0, 0, 1, 1], [], []>} : vector<32x32xf32>, vector<32x128xf32>, vector<32x128xf32> -> vector<32x128xf32>
    %51 = arith.addf %49, %50 : vector<32x128xf32>
    %52 = math.tanh %51 : vector<32x128xf32>
    %53 = arith.addi %3, %c2_i32 : i32
    %54 = vector.broadcast %53 : i32 to vector<1x128xi32>
    %55 = arith.cmpi slt, %54, %4 : vector<1x128xi32>
    %cst_21 = arith.constant -1.000000e+00 : f32
    %56 = vector.shape_cast %55 : vector<1x128xi1> to vector<1x128xi1>
    %57 = vector.broadcast %56 : vector<1x128xi1> to vector<32x128xi1>
    %58 = vector.broadcast %cst_21 : f32 to vector<32x128xf32>
    %59 = arith.select %57, %52, %58 : vector<32x128xi1>, vector<32x128xf32>
    %60 = arith.index_cast %c2_i32 : i32 to index
    %c0_22 = arith.constant 0 : index
    %c0_23 = arith.constant 0 : index
    %61 = vector.load %arg5[%60, %c0_22, %c0_23] : memref<8x32x128xf32, #tpu.memory_space<vmem>>, vector<1x32x128xf32>
    %62 = vector.shape_cast %61 : vector<1x32x128xf32> to vector<32x128xf32>
    %63 = vector.shape_cast %59 : vector<32x128xf32> to vector<1x32x128xf32>
    tpu.vector_store %arg5[%60, %c0_22, %c0_23], %63 {strides = array<i32>} : memref<8x32x128xf32, #tpu.memory_space<vmem>>, vector<1x32x128xf32>,
    %64 = vector.shape_cast %55 : vector<1x128xi1> to vector<1x128xi1>
    %65 = vector.broadcast %64 : vector<1x128xi1> to vector<32x128xi1>
    %66 = arith.select %65, %52, %46 : vector<32x128xi1>, vector<32x128xf32>
    %c3_i32 = arith.constant 3 : i32
    %67 = arith.index_cast %c3_i32 : i32 to index
    %c0_24 = arith.constant 0 : index
    %c0_25 = arith.constant 0 : index
    %68 = vector.load %arg3[%67, %c0_24, %c0_25] : memref<8x32x128xf32, #tpu.memory_space<vmem>>, vector<1x32x128xf32>
    %69 = vector.shape_cast %68 : vector<1x32x128xf32> to vector<32x128xf32>
    %cst_26 = arith.constant dense<0.000000e+00> : vector<32x128xf32>
    %70 = tpu.matmul %5, %66, %cst_26 {dimension_numbers = #tpu.dot_dimension_numbers<[1], [0], [0], [1], [0, 0, 1, 1], [], []>} : vector<32x32xf32>, vector<32x128xf32>, vector<32x128xf32> -> vector<32x128xf32>
    %71 = arith.addf %69, %70 : vector<32x128xf32>
    %72 = math.tanh %71 : vector<32x128xf32>
    %73 = arith.addi %3, %c3_i32 : i32
    %74 = vector.broadcast %73 : i32 to vector<1x128xi32>
    %75 = arith.cmpi slt, %74, %4 : vector<1x128xi32>
    %cst_27 = arith.constant -1.000000e+00 : f32
    %76 = vector.shape_cast %75 : vector<1x128xi1> to vector<1x128xi1>
    %77 = vector.broadcast %76 : vector<1x128xi1> to vector<32x128xi1>
    %78 = vector.broadcast %cst_27 : f32 to vector<32x128xf32>
    %79 = arith.select %77, %72, %78 : vector<32x128xi1>, vector<32x128xf32>
    %80 = arith.index_cast %c3_i32 : i32 to index
    %c0_28 = arith.constant 0 : index
    %c0_29 = arith.constant 0 : index
    %81 = vector.load %arg5[%80, %c0_28, %c0_29] : memref<8x32x128xf32, #tpu.memory_space<vmem>>, vector<1x32x128xf32>
    %82 = vector.shape_cast %81 : vector<1x32x128xf32> to vector<32x128xf32>
    %83 = vector.shape_cast %79 : vector<32x128xf32> to vector<1x32x128xf32>
    tpu.vector_store %arg5[%80, %c0_28, %c0_29], %83 {strides = array<i32>} : memref<8x32x128xf32, #tpu.memory_space<vmem>>, vector<1x32x128xf32>,
    %84 = vector.shape_cast %75 : vector<1x128xi1> to vector<1x128xi1>
    %85 = vector.broadcast %84 : vector<1x128xi1> to vector<32x128xi1>
    %86 = arith.select %85, %72, %66 : vector<32x128xi1>, vector<32x128xf32>
    %c4_i32 = arith.constant 4 : i32
    %87 = arith.index_cast %c4_i32 : i32 to index
    %c0_30 = arith.constant 0 : index
    %c0_31 = arith.constant 0 : index
    %88 = vector.load %arg3[%87, %c0_30, %c0_31] : memref<8x32x128xf32, #tpu.memory_space<vmem>>, vector<1x32x128xf32>
    %89 = vector.shape_cast %88 : vector<1x32x128xf32> to vector<32x128xf32>
    %cst_32 = arith.constant dense<0.000000e+00> : vector<32x128xf32>
    %90 = tpu.matmul %5, %86, %cst_32 {dimension_numbers = #tpu.dot_dimension_numbers<[1], [0], [0], [1], [0, 0, 1, 1], [], []>} : vector<32x32xf32>, vector<32x128xf32>, vector<32x128xf32> -> vector<32x128xf32>
    %91 = arith.addf %89, %90 : vector<32x128xf32>
    %92 = math.tanh %91 : vector<32x128xf32>
    %93 = arith.addi %3, %c4_i32 : i32
    %94 = vector.broadcast %93 : i32 to vector<1x128xi32>
    %95 = arith.cmpi slt, %94, %4 : vector<1x128xi32>
    %cst_33 = arith.constant -1.000000e+00 : f32
    %96 = vector.shape_cast %95 : vector<1x128xi1> to vector<1x128xi1>
    %97 = vector.broadcast %96 : vector<1x128xi1> to vector<32x128xi1>
    %98 = vector.broadcast %cst_33 : f32 to vector<32x128xf32>
    %99 = arith.select %97, %92, %98 : vector<32x128xi1>, vector<32x128xf32>
    %100 = arith.index_cast %c4_i32 : i32 to index
    %c0_34 = arith.constant 0 : index
    %c0_35 = arith.constant 0 : index
    %101 = vector.load %arg5[%100, %c0_34, %c0_35] : memref<8x32x128xf32, #tpu.memory_space<vmem>>, vector<1x32x128xf32>
    %102 = vector.shape_cast %101 : vector<1x32x128xf32> to vector<32x128xf32>
    %103 = vector.shape_cast %99 : vector<32x128xf32> to vector<1x32x128xf32>
    tpu.vector_store %arg5[%100, %c0_34, %c0_35], %103 {strides = array<i32>} : memref<8x32x128xf32, #tpu.memory_space<vmem>>, vector<1x32x128xf32>,
    %104 = vector.shape_cast %95 : vector<1x128xi1> to vector<1x128xi1>
    %105 = vector.broadcast %104 : vector<1x128xi1> to vector<32x128xi1>
    %106 = arith.select %105, %92, %86 : vector<32x128xi1>, vector<32x128xf32>
    %c5_i32 = arith.constant 5 : i32
    %107 = arith.index_cast %c5_i32 : i32 to index
    %c0_36 = arith.constant 0 : index
    %c0_37 = arith.constant 0 : index
    %108 = vector.load %arg3[%107, %c0_36, %c0_37] : memref<8x32x128xf32, #tpu.memory_space<vmem>>, vector<1x32x128xf32>
    %109 = vector.shape_cast %108 : vector<1x32x128xf32> to vector<32x128xf32>
    %cst_38 = arith.constant dense<0.000000e+00> : vector<32x128xf32>
    %110 = tpu.matmul %5, %106, %cst_38 {dimension_numbers = #tpu.dot_dimension_numbers<[1], [0], [0], [1], [0, 0, 1, 1], [], []>} : vector<32x32xf32>, vector<32x128xf32>, vector<32x128xf32> -> vector<32x128xf32>
    %111 = arith.addf %109, %110 : vector<32x128xf32>
    %112 = math.tanh %111 : vector<32x128xf32>
    %113 = arith.addi %3, %c5_i32 : i32
    %114 = vector.broadcast %113 : i32 to vector<1x128xi32>
    %115 = arith.cmpi slt, %114, %4 : vector<1x128xi32>
    %cst_39 = arith.constant -1.000000e+00 : f32
    %116 = vector.shape_cast %115 : vector<1x128xi1> to vector<1x128xi1>
    %117 = vector.broadcast %116 : vector<1x128xi1> to vector<32x128xi1>
    %118 = vector.broadcast %cst_39 : f32 to vector<32x128xf32>
    %119 = arith.select %117, %112, %118 : vector<32x128xi1>, vector<32x128xf32>
    %120 = arith.index_cast %c5_i32 : i32 to index
    %c0_40 = arith.constant 0 : index
    %c0_41 = arith.constant 0 : index
    %121 = vector.load %arg5[%120, %c0_40, %c0_41] : memref<8x32x128xf32, #tpu.memory_space<vmem>>, vector<1x32x128xf32>
    %122 = vector.shape_cast %121 : vector<1x32x128xf32> to vector<32x128xf32>
    %123 = vector.shape_cast %119 : vector<32x128xf32> to vector<1x32x128xf32>
    tpu.vector_store %arg5[%120, %c0_40, %c0_41], %123 {strides = array<i32>} : memref<8x32x128xf32, #tpu.memory_space<vmem>>, vector<1x32x128xf32>,
    %124 = vector.shape_cast %115 : vector<1x128xi1> to vector<1x128xi1>
    %125 = vector.broadcast %124 : vector<1x128xi1> to vector<32x128xi1>
    %126 = arith.select %125, %112, %106 : vector<32x128xi1>, vector<32x128xf32>
    %c6_i32 = arith.constant 6 : i32
    %127 = arith.index_cast %c6_i32 : i32 to index
    %c0_42 = arith.constant 0 : index
    %c0_43 = arith.constant 0 : index
    %128 = vector.load %arg3[%127, %c0_42, %c0_43] : memref<8x32x128xf32, #tpu.memory_space<vmem>>, vector<1x32x128xf32>
    %129 = vector.shape_cast %128 : vector<1x32x128xf32> to vector<32x128xf32>
    %cst_44 = arith.constant dense<0.000000e+00> : vector<32x128xf32>
    %130 = tpu.matmul %5, %126, %cst_44 {dimension_numbers = #tpu.dot_dimension_numbers<[1], [0], [0], [1], [0, 0, 1, 1], [], []>} : vector<32x32xf32>, vector<32x128xf32>, vector<32x128xf32> -> vector<32x128xf32>
    %131 = arith.addf %129, %130 : vector<32x128xf32>
    %132 = math.tanh %131 : vector<32x128xf32>
    %133 = arith.addi %3, %c6_i32 : i32
    %134 = vector.broadcast %133 : i32 to vector<1x128xi32>
    %135 = arith.cmpi slt, %134, %4 : vector<1x128xi32>
    %cst_45 = arith.constant -1.000000e+00 : f32
    %136 = vector.shape_cast %135 : vector<1x128xi1> to vector<1x128xi1>
    %137 = vector.broadcast %136 : vector<1x128xi1> to vector<32x128xi1>
    %138 = vector.broadcast %cst_45 : f32 to vector<32x128xf32>
    %139 = arith.select %137, %132, %138 : vector<32x128xi1>, vector<32x128xf32>
    %140 = arith.index_cast %c6_i32 : i32 to index
    %c0_46 = arith.constant 0 : index
    %c0_47 = arith.constant 0 : index
    %141 = vector.load %arg5[%140, %c0_46, %c0_47] : memref<8x32x128xf32, #tpu.memory_space<vmem>>, vector<1x32x128xf32>
    %142 = vector.shape_cast %141 : vector<1x32x128xf32> to vector<32x128xf32>
    %143 = vector.shape_cast %139 : vector<32x128xf32> to vector<1x32x128xf32>
    tpu.vector_store %arg5[%140, %c0_46, %c0_47], %143 {strides = array<i32>} : memref<8x32x128xf32, #tpu.memory_space<vmem>>, vector<1x32x128xf32>,
    %144 = vector.shape_cast %135 : vector<1x128xi1> to vector<1x128xi1>
    %145 = vector.broadcast %144 : vector<1x128xi1> to vector<32x128xi1>
    %146 = arith.select %145, %132, %126 : vector<32x128xi1>, vector<32x128xf32>
    %c7_i32 = arith.constant 7 : i32
    %147 = arith.index_cast %c7_i32 : i32 to index
    %c0_48 = arith.constant 0 : index
    %c0_49 = arith.constant 0 : index
    %148 = vector.load %arg3[%147, %c0_48, %c0_49] : memref<8x32x128xf32, #tpu.memory_space<vmem>>, vector<1x32x128xf32>
    %149 = vector.shape_cast %148 : vector<1x32x128xf32> to vector<32x128xf32>
    %cst_50 = arith.constant dense<0.000000e+00> : vector<32x128xf32>
    %150 = tpu.matmul %5, %146, %cst_50 {dimension_numbers = #tpu.dot_dimension_numbers<[1], [0], [0], [1], [0, 0, 1, 1], [], []>} : vector<32x32xf32>, vector<32x128xf32>, vector<32x128xf32> -> vector<32x128xf32>
    %151 = arith.addf %149, %150 : vector<32x128xf32>
    %152 = math.tanh %151 : vector<32x128xf32>
    %153 = arith.addi %3, %c7_i32 : i32
    %154 = vector.broadcast %153 : i32 to vector<1x128xi32>
    %155 = arith.cmpi slt, %154, %4 : vector<1x128xi32>
    %cst_51 = arith.constant -1.000000e+00 : f32
    %156 = vector.shape_cast %155 : vector<1x128xi1> to vector<1x128xi1>
    %157 = vector.broadcast %156 : vector<1x128xi1> to vector<32x128xi1>
    %158 = vector.broadcast %cst_51 : f32 to vector<32x128xf32>
    %159 = arith.select %157, %152, %158 : vector<32x128xi1>, vector<32x128xf32>
    %160 = arith.index_cast %c7_i32 : i32 to index
    %c0_52 = arith.constant 0 : index
    %c0_53 = arith.constant 0 : index
    %161 = vector.load %arg5[%160, %c0_52, %c0_53] : memref<8x32x128xf32, #tpu.memory_space<vmem>>, vector<1x32x128xf32>
    %162 = vector.shape_cast %161 : vector<1x32x128xf32> to vector<32x128xf32>
    %163 = vector.shape_cast %159 : vector<32x128xf32> to vector<1x32x128xf32>
    tpu.vector_store %arg5[%160, %c0_52, %c0_53], %163 {strides = array<i32>} : memref<8x32x128xf32, #tpu.memory_space<vmem>>, vector<1x32x128xf32>,
    %164 = vector.shape_cast %155 : vector<1x128xi1> to vector<1x128xi1>
    %165 = vector.broadcast %164 : vector<1x128xi1> to vector<32x128xi1>
    %166 = arith.select %165, %152, %146 : vector<32x128xi1>, vector<32x128xf32>
    %c8_i32_54 = arith.constant 8 : i32
    %c0_55 = arith.constant 0 : index
    %c0_56 = arith.constant 0 : index
    %167 = vector.load %arg6[%c0_55, %c0_56] : memref<32x128xf32, #tpu.memory_space<vmem>>, vector<32x128xf32>
    tpu.vector_store %arg6[%c0_55, %c0_56], %166 {strides = array<i32>} : memref<32x128xf32, #tpu.memory_space<vmem>>, vector<32x128xf32>,
    return
  }
  func.func @transform_0(%arg0: i32, %arg1: i32) -> (i32, i32) {
    %c0_i32 = arith.constant 0 : i32
    %c0_i32_0 = arith.constant 0 : i32
    return %c0_i32, %arg0 : i32, i32
  }
  func.func @transform_1(%arg0: i32, %arg1: i32) -> (i32, i32, i32) {
    %c0_i32 = arith.constant 0 : i32
    %c0_i32_0 = arith.constant 0 : i32
    return %arg1, %c0_i32, %arg0 : i32, i32, i32
  }
  func.func @transform_2(%arg0: i32, %arg1: i32) -> (i32, i32) {
    %c0_i32 = arith.constant 0 : i32
    %c0_i32_0 = arith.constant 0 : i32
    %c0_i32_1 = arith.constant 0 : i32
    return %c0_i32, %c0_i32_0 : i32, i32
  }
  func.func @transform_3(%arg0: i32, %arg1: i32) -> (i32, i32, i32) {
    %c0_i32 = arith.constant 0 : i32
    %c0_i32_0 = arith.constant 0 : i32
    return %arg1, %c0_i32, %arg0 : i32, i32, i32
  }
}

</mosaic_0001>

<llo_original>
// kernel: tpu_custom_call.1
$region0: #{tpu_custom_call.1}
  #allocation0 [shape = 'u32[]', space=smem, size = 0x4, offset = 0x4, fixed_abs, tag = 'smem constant byte address 0x4 - core index']
  #allocation1 [shape = 'u32[144,128]{1,0:T(1,128)}', space=vmem, size = 0x12000, scoped, tag = 'internal scratch']
  #allocation2 [shape = 'f32[32,128]{1,0:T(8,128)}', space=vmem, size = 0x4000, scoped, tag = 'scratch operand']
  %s0 = inlined_call_operand.hbm [shape: s32[1,128], index: 0, kind: input, shape index: {}]
  %s1 = inlined_call_operand.hbm [shape: f32[8,32,128], index: 1, kind: input, shape index: {}]
  %s2 = inlined_call_operand.hbm [shape: f32[32,32], index: 2, kind: input, shape index: {}]
  %s3 = inlined_call_operand.hbm [shape: f32[8,32,128], index: 3, kind: output, shape index: {}]
  %s4 = sld [smem:[#allocation0]]
  $region38: #{tpu_custom_call.1} parent=0
    _
  %s6 = ssub.s32 1, %s4
  %s7 = scalar_select 0, %s6, %s4
  $region1: #{tpu_custom_call.1} parent=0
    #allocation3 [shape = 'u8[512]{0}', space=vmem, size = 0x400, scoped, tag = 'input window, operand 0, single buffered']
    #allocation4 [shape = 's32[1]{0}', space=sflag, size = 0x4, scoped, tag = 'scoped memory for tpu_custom_call.1']
    #allocation5 [shape = 's32[1]{0}', space=sflag, size = 0x4, scoped, tag = 'scoped memory for tpu_custom_call.1']
    #allocation6 [shape = 'u8[131072]{0}', space=vmem, size = 0x20000, scoped, tag = 'input window, operand 1, single buffered']
    #allocation7 [shape = 's32[1]{0}', space=sflag, size = 0x4, scoped, tag = 'scoped memory for tpu_custom_call.1']
    #allocation8 [shape = 'u8[16384]{0}', space=vmem, size = 0x4000, scoped, tag = 'input window, operand 2, single buffered']
    #allocation9 [shape = 'u8[131072]{0}', space=vmem, size = 0x20000, scoped, tag = 'output window, operand 0, single buffered']
    %8 = vsyncpa [#allocation4], 0
    %9 = vsyncpa [#allocation7], 0
    %10 = vsyncpa [#allocation5], 0
    // Predicated region
    $region2: #{tpu_custom_call.1} parent=1 // pred_check
      _
    $region3: #{tpu_custom_call.1} parent=1 // pred_check_branch
      %12 = sbr.rel (0) target = $region5
    $region4: #{tpu_custom_call.1} parent=1 // pred_region
      %s14 = ssub.s32 16, 16
      %15 = vsyncadd [#allocation4], %s14
      %s17 = sshll.u32 [#allocation3], 4
      %s18 = int_to_ptr.vmem [resolvable:$true] %s17
      %20 = dma.hbm_to_vmem [thread:$0]  %s0, 16, %s18, [#allocation4]
    $region5: #{tpu_custom_call.1} parent=1 // pred_fallthru
      _
    // Predicated region
    $region6: #{tpu_custom_call.1} parent=1 // pred_check
      _
    $region7: #{tpu_custom_call.1} parent=1 // pred_check_branch
      %22 = sbr.rel (0) target = $region9
    $region8: #{tpu_custom_call.1} parent=1 // pred_region
      %s24 = ssub.s32 4096, 4096
      %25 = vsyncadd [#allocation7], %s24
      %s26 = sshll.u32 [#allocation6], 4
      %s27 = int_to_ptr.vmem [resolvable:$true] %s26
      %32 = dma.hbm_to_vmem [thread:$0]  %s1, 4096, %s27, [#allocation7], 128, 128, 8
    $region9: #{tpu_custom_call.1} parent=1 // pred_fallthru
      _
    // Predicated region
    $region10: #{tpu_custom_call.1} parent=1 // pred_check
      _
    $region11: #{tpu_custom_call.1} parent=1 // pred_check_branch
      %34 = sbr.rel (0) target = $region13
    $region12: #{tpu_custom_call.1} parent=1 // pred_region
      %s36 = ssub.s32 512, 512
      %37 = vsyncadd [#allocation7], %s36
      %s38 = sshll.u32 [#allocation8], 4
      %s39 = int_to_ptr.vmem [resolvable:$true] %s38
      %44 = dma.hbm_to_vmem [thread:$0]  %s2, 512, %s39, [#allocation7], 128, 128, 8
    $region13: #{tpu_custom_call.1} parent=1 // pred_fallthru
      _
    // Predicated region
    $region14: #{tpu_custom_call.1} parent=1 // pred_check
      _
    $region15: #{tpu_custom_call.1} parent=1 // pred_check_branch
      %46 = sbr.rel (0) target = $region17
    $region16: #{tpu_custom_call.1} parent=1 // pred_region
      %47 = dma.done [#allocation4], 16
    $region17: #{tpu_custom_call.1} parent=1 // pred_fallthru
      _
    // Predicated region
    $region18: #{tpu_custom_call.1} parent=1 // pred_check
      _
    $region19: #{tpu_custom_call.1} parent=1 // pred_check_branch
      %49 = sbr.rel (0) target = $region21
    $region20: #{tpu_custom_call.1} parent=1 // pred_region
      %50 = dma.done [#allocation7], 4096
    $region21: #{tpu_custom_call.1} parent=1 // pred_fallthru
      _
    // Predicated region
    $region22: #{tpu_custom_call.1} parent=1 // pred_check
      _
    $region23: #{tpu_custom_call.1} parent=1 // pred_check_branch
      %52 = sbr.rel (0) target = $region25
    $region24: #{tpu_custom_call.1} parent=1 // pred_region
      %53 = dma.done [#allocation7], 512
    $region25: #{tpu_custom_call.1} parent=1 // pred_fallthru
      _
    %p54 = scmp.eq.s32.totalorder 0, 0
    // Predicated region
    $region26: #{tpu_custom_call.1} parent=1 // pred_check
      %p55 = pneg %p54
    $region27: #{tpu_custom_call.1} parent=1 // pred_check_branch
      %57 = sbr.rel (%p55) target = $region29
    $region28: #{tpu_custom_call.1} parent=1 // pred_region
      %58 = vst [vmem:[#allocation2] sm:$0xff] 0.0
      %59 = vst [vmem:[#allocation2 + $0x8] sm:$0xff] 0.0
      %60 = vst [vmem:[#allocation2 + $0x10] sm:$0xff] 0.0
      %61 = vst [vmem:[#allocation2 + $0x18] sm:$0xff] 0.0
    $region29: #{tpu_custom_call.1} parent=1 // pred_fallthru
      _
    %s62 = smul.u32 0, 8
    %v63 = vld [vmem:[#allocation3] sm:$0x1]
    %v64 = vld [vmem:[#allocation8] sm:$0xff]
    %v65 = vld [vmem:[#allocation8 + $0x8] sm:$0xff]
    %v66 = vld [vmem:[#allocation8 + $0x10] sm:$0xff]
    %v67 = vld [vmem:[#allocation8 + $0x18] sm:$0xff]
    %v68 = vld [vmem:[#allocation2] sm:$0xff]
    %v69 = vld [vmem:[#allocation2 + $0x8] sm:$0xff]
    %v70 = vld [vmem:[#allocation2 + $0x10] sm:$0xff]
    %v71 = vld [vmem:[#allocation2 + $0x18] sm:$0xff]
    %v72 = vld [vmem:[#allocation6] sm:$0xff]
    %v73 = vld [vmem:[#allocation6 + $0x8] sm:$0xff]
    %v74 = vld [vmem:[#allocation6 + $0x10] sm:$0xff]
    %v75 = vld [vmem:[#allocation6 + $0x18] sm:$0xff]
    %vm76 = vcmask 261120
    %v78 = vsel %vm76, %v64, 0
    %v81 = vsel %vm76, %v65, 0
    %v84 = vsel %vm76, %v66, 0
    %v87 = vsel %vm76, %v67, 0
    %89 = vmatprep.subr.mxu0 0.0
    %90 = vmatpush1.msra.mxu0 0.0
    %91 = vmatprep.subr.mxu0 0.0
    %92 = vmatpush1.msra.mxu0 0.0
    %93 = vmatprep.subr.mxu0 0.0
    %94 = vmatpush1.msra.mxu0 0.0
    %95 = vmatprep.subr.mxu0 0.0
    %96 = vmatpush1.msra.mxu0 0.0
    %97 = vmatprep.subr.mxu0 0.0
    %98 = vmatpush1.msra.mxu0 0.0
    %99 = vmatprep.subr.mxu0 0.0
    %100 = vmatpush1.msra.mxu0 0.0
    %101 = vmatprep.subr.mxu0 0.0
    %102 = vmatpush1.msra.mxu0 0.0
    %103 = vmatprep.subr.mxu0 0.0
    %104 = vmatpush1.msra.mxu0 0.0
    %105 = vmatprep.subr.mxu0 0.0
    %106 = vmatpush1.msra.mxu0 0.0
    %107 = vmatprep.subr.mxu0 0.0
    %108 = vmatpush1.msra.mxu0 0.0
    %109 = vmatprep.subr.mxu0 0.0
    %110 = vmatpush1.msra.mxu0 0.0
    %111 = vmatprep.subr.mxu0 0.0
    %112 = vmatpush1.msra.mxu0 0.0
    %113 = vmatprep.subr.mxu0 0.0
    %114 = vmatpush1.msra.mxu0 %v71
    %115 = vmatprep.subr.mxu0 0.0
    %116 = vmatpush1.msra.mxu0 %v70
    %117 = vmatprep.subr.mxu0 0.0
    %118 = vmatpush1.msra.mxu0 %v69
    %119 = vmatprep.subr.mxu0 0.0
    %120 = vmatpush1.msra.mxu0 %v68
    %121 = vmatprep.subr.mxu0 0.0
    %122 = vmatpush2.msra.mxu0 0.0
    %123 = vmatprep.subr.mxu0 0.0
    %124 = vmatpush2.msra.mxu0 0.0
    %125 = vmatprep.subr.mxu0 0.0
    %126 = vmatpush2.msra.mxu0 0.0
    %127 = vmatprep.subr.mxu0 0.0
    %128 = vmatpush2.msra.mxu0 0.0
    %129 = vmatprep.subr.mxu0 0.0
    %130 = vmatpush2.msra.mxu0 0.0
    %131 = vmatprep.subr.mxu0 0.0
    %132 = vmatpush2.msra.mxu0 0.0
    %133 = vmatprep.subr.mxu0 0.0
    %134 = vmatpush2.msra.mxu0 0.0
    %135 = vmatprep.subr.mxu0 0.0
    %136 = vmatpush2.msra.mxu0 0.0
    %137 = vmatprep.subr.mxu0 0.0
    %138 = vmatpush2.msra.mxu0 0.0
    %139 = vmatprep.subr.mxu0 0.0
    %140 = vmatpush2.msra.mxu0 0.0
    %141 = vmatprep.subr.mxu0 0.0
    %142 = vmatpush2.msra.mxu0 0.0
    %143 = vmatprep.subr.mxu0 0.0
    %144 = vmatpush2.msra.mxu0 0.0
    %145 = vmatprep.subr.mxu0 0.0
    %146 = vmatpush2.msra.mxu0 0.0
    %147 = vmatprep.subr.mxu0 0.0
    %148 = vmatpush2.msra.mxu0 0.0
    %149 = vmatprep.subr.mxu0 0.0
    %150 = vmatpush2.msra.mxu0 0.0
    %151 = vmatprep.subr.mxu0 0.0
    %152 = vmatpush2.msra.mxu0 0.0
    %153 = vmatprep.mubr.f32.mxu0 0.0
    %154 = vmatmul.mubr.f32.gmra.mxu0 %v78
    %v155 = vpop.f32.mrf.mxu0
    %v156 = vadd.f32 0.0, %v155
    %v157 = vpop.f32.mrf.mxu0
    %158 = vmatprep.mubr.f32.mxu0 0.0
    %159 = vmatmul.mubr.f32.gmra.mxu0 %v81
    %v160 = vpop.f32.mrf.mxu0
    %v161 = vadd.f32 0.0, %v160
    %v162 = vpop.f32.mrf.mxu0
    %163 = vmatprep.mubr.f32.mxu0 0.0
    %164 = vmatmul.mubr.f32.gmra.mxu0 %v84
    %v165 = vpop.f32.mrf.mxu0
    %v166 = vadd.f32 0.0, %v165
    %v167 = vpop.f32.mrf.mxu0
    %168 = vmatprep.mubr.f32.mxu0 0.0
    %169 = vmatmul.mubr.f32.gmra.mxu0 %v87
    %v170 = vpop.f32.mrf.mxu0
    %v171 = vadd.f32 0.0, %v170
    %v172 = vpop.f32.mrf.mxu0
    %173 = vdwg.mxu0
    %v174 = vadd.f32 %v72, %v156
    %v175 = vadd.f32 %v73, %v161
    %v176 = vadd.f32 %v74, %v166
    %v177 = vadd.f32 %v75, %v171
    %v178 = vtanh.pop %v174
    %v179 = vtanh.pop %v175
    %v180 = vtanh.pop %v176
    %v181 = vtanh.pop %v177
    %v182 = vstv %s62
    %vm183 = vcmp.lt.s32.totalorder %v182, %v63
    %v184 = vsel %vm183, 1, 0
    %v185 = vlaneseq
    %v186 = vshrl.u32 %v185, 7
    %v187 = vsub.s32 0, %v186
    %v188 = vrot.slane %v184, %v187
    %vm189 = vcmp.eq.s32.totalorder %v188, 1
    %v190 = vsel %vm189, %v178, -1.0
    %v191 = vsel %vm189, %v179, -1.0
    %v192 = vsel %vm189, %v180, -1.0
    %v193 = vsel %vm189, %v181, -1.0
    %194 = vst [vmem:[#allocation9] sm:$0xff] %v190
    %195 = vst [vmem:[#allocation9 + $0x8] sm:$0xff] %v191
    %196 = vst [vmem:[#allocation9 + $0x10] sm:$0xff] %v192
    %197 = vst [vmem:[#allocation9 + $0x18] sm:$0xff] %v193
    %v198 = vsel %vm189, %v178, %v68
    %v199 = vsel %vm189, %v179, %v69
    %v200 = vsel %vm189, %v180, %v70
    %v201 = vsel %vm189, %v181, %v71
    %s202 = scalar_lea.vmem [#allocation6], 32
    %v203 = vld [vmem:[%s202] sm:$0xff]
    %v204 = vld [vmem:[%s202 + $0x8] sm:$0xff]
    %v205 = vld [vmem:[%s202 + $0x10] sm:$0xff]
    %v206 = vld [vmem:[%s202 + $0x18] sm:$0xff]
    %207 = vmatprep.subr.mxu0 0.0
    %208 = vmatpush1.msra.mxu0 0.0
    %209 = vmatprep.subr.mxu0 0.0
    %210 = vmatpush1.msra.mxu0 0.0
    %211 = vmatprep.subr.mxu0 0.0
    %212 = vmatpush1.msra.mxu0 0.0
    %213 = vmatprep.subr.mxu0 0.0
    %214 = vmatpush1.msra.mxu0 0.0
    %215 = vmatprep.subr.mxu0 0.0
    %216 = vmatpush1.msra.mxu0 0.0
    %217 = vmatprep.subr.mxu0 0.0
    %218 = vmatpush1.msra.mxu0 0.0
    %219 = vmatprep.subr.mxu0 0.0
    %220 = vmatpush1.msra.mxu0 0.0
    %221 = vmatprep.subr.mxu0 0.0
    %222 = vmatpush1.msra.mxu0 0.0
    %223 = vmatprep.subr.mxu0 0.0
    %224 = vmatpush1.msra.mxu0 0.0
    %225 = vmatprep.subr.mxu0 0.0
    %226 = vmatpush1.msra.mxu0 0.0
    %227 = vmatprep.subr.mxu0 0.0
    %228 = vmatpush1.msra.mxu0 0.0
    %229 = vmatprep.subr.mxu0 0.0
    %230 = vmatpush1.msra.mxu0 0.0
    %231 = vmatprep.subr.mxu0 0.0
    %232 = vmatpush1.msra.mxu0 %v201
    %233 = vmatprep.subr.mxu0 0.0
    %234 = vmatpush1.msra.mxu0 %v200
    %235 = vmatprep.subr.mxu0 0.0
    %236 = vmatpush1.msra.mxu0 %v199
    %237 = vmatprep.subr.mxu0 0.0
    %238 = vmatpush1.msra.mxu0 %v198
    %239 = vmatprep.subr.mxu0 0.0
    %240 = vmatpush2.msra.mxu0 0.0
    %241 = vmatprep.subr.mxu0 0.0
    %242 = vmatpush2.msra.mxu0 0.0
    %243 = vmatprep.subr.mxu0 0.0
    %244 = vmatpush2.msra.mxu0 0.0
    %245 = vmatprep.subr.mxu0 0.0
    %246 = vmatpush2.msra.mxu0 0.0
    %247 = vmatprep.subr.mxu0 0.0
    %248 = vmatpush2.msra.mxu0 0.0
    %249 = vmatprep.subr.mxu0 0.0
    %250 = vmatpush2.msra.mxu0 0.0
    %251 = vmatprep.subr.mxu0 0.0
    %252 = vmatpush2.msra.mxu0 0.0
    %253 = vmatprep.subr.mxu0 0.0
    %254 = vmatpush2.msra.mxu0 0.0
    %255 = vmatprep.subr.mxu0 0.0
    %256 = vmatpush2.msra.mxu0 0.0
    %257 = vmatprep.subr.mxu0 0.0
    %258 = vmatpush2.msra.mxu0 0.0
    %259 = vmatprep.subr.mxu0 0.0
    %260 = vmatpush2.msra.mxu0 0.0
    %261 = vmatprep.subr.mxu0 0.0
    %262 = vmatpush2.msra.mxu0 0.0
    %263 = vmatprep.subr.mxu0 0.0
    %264 = vmatpush2.msra.mxu0 0.0
    %265 = vmatprep.subr.mxu0 0.0
    %266 = vmatpush2.msra.mxu0 0.0
    %267 = vmatprep.subr.mxu0 0.0
    %268 = vmatpush2.msra.mxu0 0.0
    %269 = vmatprep.subr.mxu0 0.0
    %270 = vmatpush2.msra.mxu0 0.0
    %271 = vmatprep.mubr.f32.mxu0 0.0
    %272 = vmatmul.mubr.f32.gmra.mxu0 %v78
    %v273 = vpop.f32.mrf.mxu0
    %v274 = vadd.f32 0.0, %v273
    %v275 = vpop.f32.mrf.mxu0
    %276 = vmatprep.mubr.f32.mxu0 0.0
    %277 = vmatmul.mubr.f32.gmra.mxu0 %v81
    %v278 = vpop.f32.mrf.mxu0
    %v279 = vadd.f32 0.0, %v278
    %v280 = vpop.f32.mrf.mxu0
    %281 = vmatprep.mubr.f32.mxu0 0.0
    %282 = vmatmul.mubr.f32.gmra.mxu0 %v84
    %v283 = vpop.f32.mrf.mxu0
    %v284 = vadd.f32 0.0, %v283
    %v285 = vpop.f32.mrf.mxu0
    %286 = vmatprep.mubr.f32.mxu0 0.0
    %287 = vmatmul.mubr.f32.gmra.mxu0 %v87
    %v288 = vpop.f32.mrf.mxu0
    %v289 = vadd.f32 0.0, %v288
    %v290 = vpop.f32.mrf.mxu0
    %291 = vdwg.mxu0
    %v292 = vadd.f32 %v203, %v274
    %v293 = vadd.f32 %v204, %v279
    %v294 = vadd.f32 %v205, %v284
    %v295 = vadd.f32 %v206, %v289
    %v296 = vtanh.pop %v292
    %v297 = vtanh.pop %v293
    %v298 = vtanh.pop %v294
    %v299 = vtanh.pop %v295
    %s300 = sadd.s32 %s62, 1
    %v301 = vstv %s300
    %vm302 = vcmp.lt.s32.totalorder %v301, %v63
    %v303 = vsel %vm302, 1, 0
    %v304 = vlaneseq
    %v305 = vshrl.u32 %v304, 7
    %v306 = vsub.s32 0, %v305
    %v307 = vrot.slane %v303, %v306
    %vm308 = vcmp.eq.s32.totalorder %v307, 1
    %v309 = vsel %vm308, %v296, -1.0
    %v310 = vsel %vm308, %v297, -1.0
    %v311 = vsel %vm308, %v298, -1.0
    %v312 = vsel %vm308, %v299, -1.0
    %s313 = scalar_lea.vmem [#allocation9], 32
    %314 = vst [vmem:[%s313] sm:$0xff] %v309
    %315 = vst [vmem:[%s313 + $0x8] sm:$0xff] %v310
    %316 = vst [vmem:[%s313 + $0x10] sm:$0xff] %v311
    %317 = vst [vmem:[%s313 + $0x18] sm:$0xff] %v312
    %v318 = vsel %vm308, %v296, %v198
    %v319 = vsel %vm308, %v297, %v199
    %v320 = vsel %vm308, %v298, %v200
    %v321 = vsel %vm308, %v299, %v201
    %s322 = scalar_lea.vmem [#allocation6], 64
    %v323 = vld [vmem:[%s322] sm:$0xff]
    %v324 = vld [vmem:[%s322 + $0x8] sm:$0xff]
    %v325 = vld [vmem:[%s322 + $0x10] sm:$0xff]
    %v326 = vld [vmem:[%s322 + $0x18] sm:$0xff]
    %327 = vmatprep.subr.mxu0 0.0
    %328 = vmatpush1.msra.mxu0 0.0
    %329 = vmatprep.subr.mxu0 0.0
    %330 = vmatpush1.msra.mxu0 0.0
    %331 = vmatprep.subr.mxu0 0.0
    %332 = vmatpush1.msra.mxu0 0.0
    %333 = vmatprep.subr.mxu0 0.0
    %334 = vmatpush1.msra.mxu0 0.0
    %335 = vmatprep.subr.mxu0 0.0
    %336 = vmatpush1.msra.mxu0 0.0
    %337 = vmatprep.subr.mxu0 0.0
    %338 = vmatpush1.msra.mxu0 0.0
    %339 = vmatprep.subr.mxu0 0.0
    %340 = vmatpush1.msra.mxu0 0.0
    %341 = vmatprep.subr.mxu0 0.0
    %342 = vmatpush1.msra.mxu0 0.0
    %343 = vmatprep.subr.mxu0 0.0
    %344 = vmatpush1.msra.mxu0 0.0
    %345 = vmatprep.subr.mxu0 0.0
    %346 = vmatpush1.msra.mxu0 0.0
    %347 = vmatprep.subr.mxu0 0.0
    %348 = vmatpush1.msra.mxu0 0.0
    %349 = vmatprep.subr.mxu0 0.0
    %350 = vmatpush1.msra.mxu0 0.0
    %351 = vmatprep.subr.mxu0 0.0
    %352 = vmatpush1.msra.mxu0 %v321
    %353 = vmatprep.subr.mxu0 0.0
    %354 = vmatpush1.msra.mxu0 %v320
    %355 = vmatprep.subr.mxu0 0.0
    %356 = vmatpush1.msra.mxu0 %v319
    %357 = vmatprep.subr.mxu0 0.0
    %358 = vmatpush1.msra.mxu0 %v318
    %359 = vmatprep.subr.mxu0 0.0
    %360 = vmatpush2.msra.mxu0 0.0
    %361 = vmatprep.subr.mxu0 0.0
    %362 = vmatpush2.msra.mxu0 0.0
    %363 = vmatprep.subr.mxu0 0.0
    %364 = vmatpush2.msra.mxu0 0.0
    %365 = vmatprep.subr.mxu0 0.0
    %366 = vmatpush2.msra.mxu0 0.0
    %367 = vmatprep.subr.mxu0 0.0
    %368 = vmatpush2.msra.mxu0 0.0
    %369 = vmatprep.subr.mxu0 0.0
    %370 = vmatpush2.msra.mxu0 0.0
    %371 = vmatprep.subr.mxu0 0.0
    %372 = vmatpush2.msra.mxu0 0.0
    %373 = vmatprep.subr.mxu0 0.0
    %374 = vmatpush2.msra.mxu0 0.0
    %375 = vmatprep.subr.mxu0 0.0
    %376 = vmatpush2.msra.mxu0 0.0
    %377 = vmatprep.subr.mxu0 0.0
    %378 = vmatpush2.msra.mxu0 0.0
    %379 = vmatprep.subr.mxu0 0.0
    %380 = vmatpush2.msra.mxu0 0.0
    %381 = vmatprep.subr.mxu0 0.0
    %382 = vmatpush2.msra.mxu0 0.0
    %383 = vmatprep.subr.mxu0 0.0
    %384 = vmatpush2.msra.mxu0 0.0
    %385 = vmatprep.subr.mxu0 0.0
    %386 = vmatpush2.msra.mxu0 0.0
    %387 = vmatprep.subr.mxu0 0.0
    %388 = vmatpush2.msra.mxu0 0.0
    %389 = vmatprep.subr.mxu0 0.0
    %390 = vmatpush2.msra.mxu0 0.0
    %391 = vmatprep.mubr.f32.mxu0 0.0
    %392 = vmatmul.mubr.f32.gmra.mxu0 %v78
    %v393 = vpop.f32.mrf.mxu0
    %v394 = vadd.f32 0.0, %v393
    %v395 = vpop.f32.mrf.mxu0
    %396 = vmatprep.mubr.f32.mxu0 0.0
    %397 = vmatmul.mubr.f32.gmra.mxu0 %v81
    %v398 = vpop.f32.mrf.mxu0
    %v399 = vadd.f32 0.0, %v398
    %v400 = vpop.f32.mrf.mxu0
    %401 = vmatprep.mubr.f32.mxu0 0.0
    %402 = vmatmul.mubr.f32.gmra.mxu0 %v84
    %v403 = vpop.f32.mrf.mxu0
    %v404 = vadd.f32 0.0, %v403
    %v405 = vpop.f32.mrf.mxu0
    %406 = vmatprep.mubr.f32.mxu0 0.0
    %407 = vmatmul.mubr.f32.gmra.mxu0 %v87
    %v408 = vpop.f32.mrf.mxu0
    %v409 = vadd.f32 0.0, %v408
    %v410 = vpop.f32.mrf.mxu0
    %411 = vdwg.mxu0
    %v412 = vadd.f32 %v323, %v394
    %v413 = vadd.f32 %v324, %v399
    %v414 = vadd.f32 %v325, %v404
    %v415 = vadd.f32 %v326, %v409
    %v416 = vtanh.pop %v412
    %v417 = vtanh.pop %v413
    %v418 = vtanh.pop %v414
    %v419 = vtanh.pop %v415
    %s420 = sadd.s32 %s62, 2
    %v421 = vstv %s420
    %vm422 = vcmp.lt.s32.totalorder %v421, %v63
    %v423 = vsel %vm422, 1, 0
    %v424 = vlaneseq
    %v425 = vshrl.u32 %v424, 7
    %v426 = vsub.s32 0, %v425
    %v427 = vrot.slane %v423, %v426
    %vm428 = vcmp.eq.s32.totalorder %v427, 1
    %v429 = vsel %vm428, %v416, -1.0
    %v430 = vsel %vm428, %v417, -1.0
    %v431 = vsel %vm428, %v418, -1.0
    %v432 = vsel %vm428, %v419, -1.0
    %s433 = scalar_lea.vmem [#allocation9], 64
    %434 = vst [vmem:[%s433] sm:$0xff] %v429
    %435 = vst [vmem:[%s433 + $0x8] sm:$0xff] %v430
    %436 = vst [vmem:[%s433 + $0x10] sm:$0xff] %v431
    %437 = vst [vmem:[%s433 + $0x18] sm:$0xff] %v432
    %v438 = vsel %vm428, %v416, %v318
    %v439 = vsel %vm428, %v417, %v319
    %v440 = vsel %vm428, %v418, %v320
    %v441 = vsel %vm428, %v419, %v321
    %s442 = scalar_lea.vmem [#allocation6], 96
    %v443 = vld [vmem:[%s442] sm:$0xff]
    %v444 = vld [vmem:[%s442 + $0x8] sm:$0xff]
    %v445 = vld [vmem:[%s442 + $0x10] sm:$0xff]
    %v446 = vld [vmem:[%s442 + $0x18] sm:$0xff]
    %447 = vmatprep.subr.mxu0 0.0
    %448 = vmatpush1.msra.mxu0 0.0
    %449 = vmatprep.subr.mxu0 0.0
    %450 = vmatpush1.msra.mxu0 0.0
    %451 = vmatprep.subr.mxu0 0.0
    %452 = vmatpush1.msra.mxu0 0.0
    %453 = vmatprep.subr.mxu0 0.0
    %454 = vmatpush1.msra.mxu0 0.0
    %455 = vmatprep.subr.mxu0 0.0
    %456 = vmatpush1.msra.mxu0 0.0
    %457 = vmatprep.subr.mxu0 0.0
    %458 = vmatpush1.msra.mxu0 0.0
    %459 = vmatprep.subr.mxu0 0.0
    %460 = vmatpush1.msra.mxu0 0.0
    %461 = vmatprep.subr.mxu0 0.0
    %462 = vmatpush1.msra.mxu0 0.0
    %463 = vmatprep.subr.mxu0 0.0
    %464 = vmatpush1.msra.mxu0 0.0
    %465 = vmatprep.subr.mxu0 0.0
    %466 = vmatpush1.msra.mxu0 0.0
    %467 = vmatprep.subr.mxu0 0.0
    %468 = vmatpush1.msra.mxu0 0.0
    %469 = vmatprep.subr.mxu0 0.0
    %470 = vmatpush1.msra.mxu0 0.0
    %471 = vmatprep.subr.mxu0 0.0
    %472 = vmatpush1.msra.mxu0 %v441
    %473 = vmatprep.subr.mxu0 0.0
    %474 = vmatpush1.msra.mxu0 %v440
    %475 = vmatprep.subr.mxu0 0.0
    %476 = vmatpush1.msra.mxu0 %v439
    %477 = vmatprep.subr.mxu0 0.0
    %478 = vmatpush1.msra.mxu0 %v438
    %479 = vmatprep.subr.mxu0 0.0
    %480 = vmatpush2.msra.mxu0 0.0
    %481 = vmatprep.subr.mxu0 0.0
    %482 = vmatpush2.msra.mxu0 0.0
    %483 = vmatprep.subr.mxu0 0.0
    %484 = vmatpush2.msra.mxu0 0.0
    %485 = vmatprep.subr.mxu0 0.0
    %486 = vmatpush2.msra.mxu0 0.0
    %487 = vmatprep.subr.mxu0 0.0
    %488 = vmatpush2.msra.mxu0 0.0
    %489 = vmatprep.subr.mxu0 0.0
    %490 = vmatpush2.msra.mxu0 0.0
    %491 = vmatprep.subr.mxu0 0.0
    %492 = vmatpush2.msra.mxu0 0.0
    %493 = vmatprep.subr.mxu0 0.0
    %494 = vmatpush2.msra.mxu0 0.0
    %495 = vmatprep.subr.mxu0 0.0
    %496 = vmatpush2.msra.mxu0 0.0
    %497 = vmatprep.subr.mxu0 0.0
    %498 = vmatpush2.msra.mxu0 0.0
    %499 = vmatprep.subr.mxu0 0.0
    %500 = vmatpush2.msra.mxu0 0.0
    %501 = vmatprep.subr.mxu0 0.0
    %502 = vmatpush2.msra.mxu0 0.0
    %503 = vmatprep.subr.mxu0 0.0
    %504 = vmatpush2.msra.mxu0 0.0
    %505 = vmatprep.subr.mxu0 0.0
    %506 = vmatpush2.msra.mxu0 0.0
    %507 = vmatprep.subr.mxu0 0.0
    %508 = vmatpush2.msra.mxu0 0.0
    %509 = vmatprep.subr.mxu0 0.0
    %510 = vmatpush2.msra.mxu0 0.0
    %511 = vmatprep.mubr.f32.mxu0 0.0
    %512 = vmatmul.mubr.f32.gmra.mxu0 %v78
    %v513 = vpop.f32.mrf.mxu0
    %v514 = vadd.f32 0.0, %v513
    %v515 = vpop.f32.mrf.mxu0
    %516 = vmatprep.mubr.f32.mxu0 0.0
    %517 = vmatmul.mubr.f32.gmra.mxu0 %v81
    %v518 = vpop.f32.mrf.mxu0
    %v519 = vadd.f32 0.0, %v518
    %v520 = vpop.f32.mrf.mxu0
    %521 = vmatprep.mubr.f32.mxu0 0.0
    %522 = vmatmul.mubr.f32.gmra.mxu0 %v84
    %v523 = vpop.f32.mrf.mxu0
    %v524 = vadd.f32 0.0, %v523
    %v525 = vpop.f32.mrf.mxu0
    %526 = vmatprep.mubr.f32.mxu0 0.0
    %527 = vmatmul.mubr.f32.gmra.mxu0 %v87
    %v528 = vpop.f32.mrf.mxu0
    %v529 = vadd.f32 0.0, %v528
    %v530 = vpop.f32.mrf.mxu0
    %531 = vdwg.mxu0
    %v532 = vadd.f32 %v443, %v514
    %v533 = vadd.f32 %v444, %v519
    %v534 = vadd.f32 %v445, %v524
    %v535 = vadd.f32 %v446, %v529
    %v536 = vtanh.pop %v532
    %v537 = vtanh.pop %v533
    %v538 = vtanh.pop %v534
    %v539 = vtanh.pop %v535
    %s540 = sadd.s32 %s62, 3
    %v541 = vstv %s540
    %vm542 = vcmp.lt.s32.totalorder %v541, %v63
    %v543 = vsel %vm542, 1, 0
    %v544 = vlaneseq
    %v545 = vshrl.u32 %v544, 7
    %v546 = vsub.s32 0, %v545
    %v547 = vrot.slane %v543, %v546
    %vm548 = vcmp.eq.s32.totalorder %v547, 1
    %v549 = vsel %vm548, %v536, -1.0
    %v550 = vsel %vm548, %v537, -1.0
    %v551 = vsel %vm548, %v538, -1.0
    %v552 = vsel %vm548, %v539, -1.0
    %s553 = scalar_lea.vmem [#allocation9], 96
    %554 = vst [vmem:[%s553] sm:$0xff] %v549
    %555 = vst [vmem:[%s553 + $0x8] sm:$0xff] %v550
    %556 = vst [vmem:[%s553 + $0x10] sm:$0xff] %v551
    %557 = vst [vmem:[%s553 + $0x18] sm:$0xff] %v552
    %v558 = vsel %vm548, %v536, %v438
    %v559 = vsel %vm548, %v537, %v439
    %v560 = vsel %vm548, %v538, %v440
    %v561 = vsel %vm548, %v539, %v441
    %s562 = scalar_lea.vmem [#allocation6], 128
    %v563 = vld [vmem:[%s562] sm:$0xff]
    %v564 = vld [vmem:[%s562 + $0x8] sm:$0xff]
    %v565 = vld [vmem:[%s562 + $0x10] sm:$0xff]
    %v566 = vld [vmem:[%s562 + $0x18] sm:$0xff]
    %567 = vmatprep.subr.mxu0 0.0
    %568 = vmatpush1.msra.mxu0 0.0
    %569 = vmatprep.subr.mxu0 0.0
    %570 = vmatpush1.msra.mxu0 0.0
    %571 = vmatprep.subr.mxu0 0.0
    %572 = vmatpush1.msra.mxu0 0.0
    %573 = vmatprep.subr.mxu0 0.0
    %574 = vmatpush1.msra.mxu0 0.0
    %575 = vmatprep.subr.mxu0 0.0
    %576 = vmatpush1.msra.mxu0 0.0
    %577 = vmatprep.subr.mxu0 0.0
    %578 = vmatpush1.msra.mxu0 0.0
    %579 = vmatprep.subr.mxu0 0.0
    %580 = vmatpush1.msra.mxu0 0.0
    %581 = vmatprep.subr.mxu0 0.0
    %582 = vmatpush1.msra.mxu0 0.0
    %583 = vmatprep.subr.mxu0 0.0
    %584 = vmatpush1.msra.mxu0 0.0
    %585 = vmatprep.subr.mxu0 0.0
    %586 = vmatpush1.msra.mxu0 0.0
    %587 = vmatprep.subr.mxu0 0.0
    %588 = vmatpush1.msra.mxu0 0.0
    %589 = vmatprep.subr.mxu0 0.0
    %590 = vmatpush1.msra.mxu0 0.0
    %591 = vmatprep.subr.mxu0 0.0
    %592 = vmatpush1.msra.mxu0 %v561
    %593 = vmatprep.subr.mxu0 0.0
    %594 = vmatpush1.msra.mxu0 %v560
    %595 = vmatprep.subr.mxu0 0.0
    %596 = vmatpush1.msra.mxu0 %v559
    %597 = vmatprep.subr.mxu0 0.0
    %598 = vmatpush1.msra.mxu0 %v558
    %599 = vmatprep.subr.mxu0 0.0
    %600 = vmatpush2.msra.mxu0 0.0
    %601 = vmatprep.subr.mxu0 0.0
    %602 = vmatpush2.msra.mxu0 0.0
    %603 = vmatprep.subr.mxu0 0.0
    %604 = vmatpush2.msra.mxu0 0.0
    %605 = vmatprep.subr.mxu0 0.0
    %606 = vmatpush2.msra.mxu0 0.0
    %607 = vmatprep.subr.mxu0 0.0
    %608 = vmatpush2.msra.mxu0 0.0
    %609 = vmatprep.subr.mxu0 0.0
    %610 = vmatpush2.msra.mxu0 0.0
    %611 = vmatprep.subr.mxu0 0.0
    %612 = vmatpush2.msra.mxu0 0.0
    %613 = vmatprep.subr.mxu0 0.0
    %614 = vmatpush2.msra.mxu0 0.0
    %615 = vmatprep.subr.mxu0 0.0
    %616 = vmatpush2.msra.mxu0 0.0
    %617 = vmatprep.subr.mxu0 0.0
    %618 = vmatpush2.msra.mxu0 0.0
    %619 = vmatprep.subr.mxu0 0.0
    %620 = vmatpush2.msra.mxu0 0.0
    %621 = vmatprep.subr.mxu0 0.0
    %622 = vmatpush2.msra.mxu0 0.0
    %623 = vmatprep.subr.mxu0 0.0
    %624 = vmatpush2.msra.mxu0 0.0
    %625 = vmatprep.subr.mxu0 0.0
    %626 = vmatpush2.msra.mxu0 0.0
    %627 = vmatprep.subr.mxu0 0.0
    %628 = vmatpush2.msra.mxu0 0.0
    %629 = vmatprep.subr.mxu0 0.0
    %630 = vmatpush2.msra.mxu0 0.0
    %631 = vmatprep.mubr.f32.mxu0 0.0
    %632 = vmatmul.mubr.f32.gmra.mxu0 %v78
    %v633 = vpop.f32.mrf.mxu0
    %v634 = vadd.f32 0.0, %v633
    %v635 = vpop.f32.mrf.mxu0
    %636 = vmatprep.mubr.f32.mxu0 0.0
    %637 = vmatmul.mubr.f32.gmra.mxu0 %v81
    %v638 = vpop.f32.mrf.mxu0
    %v639 = vadd.f32 0.0, %v638
    %v640 = vpop.f32.mrf.mxu0
    %641 = vmatprep.mubr.f32.mxu0 0.0
    %642 = vmatmul.mubr.f32.gmra.mxu0 %v84
    %v643 = vpop.f32.mrf.mxu0
    %v644 = vadd.f32 0.0, %v643
    %v645 = vpop.f32.mrf.mxu0
    %646 = vmatprep.mubr.f32.mxu0 0.0
    %647 = vmatmul.mubr.f32.gmra.mxu0 %v87
    %v648 = vpop.f32.mrf.mxu0
    %v649 = vadd.f32 0.0, %v648
    %v650 = vpop.f32.mrf.mxu0
    %651 = vdwg.mxu0
    %v652 = vadd.f32 %v563, %v634
    %v653 = vadd.f32 %v564, %v639
    %v654 = vadd.f32 %v565, %v644
    %v655 = vadd.f32 %v566, %v649
    %v656 = vtanh.pop %v652
    %v657 = vtanh.pop %v653
    %v658 = vtanh.pop %v654
    %v659 = vtanh.pop %v655
    %s660 = sadd.s32 %s62, 4
    %v661 = vstv %s660
    %vm662 = vcmp.lt.s32.totalorder %v661, %v63
    %v663 = vsel %vm662, 1, 0
    %v664 = vlaneseq
    %v665 = vshrl.u32 %v664, 7
    %v666 = vsub.s32 0, %v665
    %v667 = vrot.slane %v663, %v666
    %vm668 = vcmp.eq.s32.totalorder %v667, 1
    %v669 = vsel %vm668, %v656, -1.0
    %v670 = vsel %vm668, %v657, -1.0
    %v671 = vsel %vm668, %v658, -1.0
    %v672 = vsel %vm668, %v659, -1.0
    %s673 = scalar_lea.vmem [#allocation9], 128
    %674 = vst [vmem:[%s673] sm:$0xff] %v669
    %675 = vst [vmem:[%s673 + $0x8] sm:$0xff] %v670
    %676 = vst [vmem:[%s673 + $0x10] sm:$0xff] %v671
    %677 = vst [vmem:[%s673 + $0x18] sm:$0xff] %v672
    %v678 = vsel %vm668, %v656, %v558
    %v679 = vsel %vm668, %v657, %v559
    %v680 = vsel %vm668, %v658, %v560
    %v681 = vsel %vm668, %v659, %v561
    %s682 = scalar_lea.vmem [#allocation6], 160
    %v683 = vld [vmem:[%s682] sm:$0xff]
    %v684 = vld [vmem:[%s682 + $0x8] sm:$0xff]
    %v685 = vld [vmem:[%s682 + $0x10] sm:$0xff]
    %v686 = vld [vmem:[%s682 + $0x18] sm:$0xff]
    %687 = vmatprep.subr.mxu0 0.0
    %688 = vmatpush1.msra.mxu0 0.0
    %689 = vmatprep.subr.mxu0 0.0
    %690 = vmatpush1.msra.mxu0 0.0
    %691 = vmatprep.subr.mxu0 0.0
    %692 = vmatpush1.msra.mxu0 0.0
    %693 = vmatprep.subr.mxu0 0.0
    %694 = vmatpush1.msra.mxu0 0.0
    %695 = vmatprep.subr.mxu0 0.0
    %696 = vmatpush1.msra.mxu0 0.0
    %697 = vmatprep.subr.mxu0 0.0
    %698 = vmatpush1.msra.mxu0 0.0
    %699 = vmatprep.subr.mxu0 0.0
    %700 = vmatpush1.msra.mxu0 0.0
    %701 = vmatprep.subr.mxu0 0.0
    %702 = vmatpush1.msra.mxu0 0.0
    %703 = vmatprep.subr.mxu0 0.0
    %704 = vmatpush1.msra.mxu0 0.0
    %705 = vmatprep.subr.mxu0 0.0
    %706 = vmatpush1.msra.mxu0 0.0
    %707 = vmatprep.subr.mxu0 0.0
    %708 = vmatpush1.msra.mxu0 0.0
    %709 = vmatprep.subr.mxu0 0.0
    %710 = vmatpush1.msra.mxu0 0.0
    %711 = vmatprep.subr.mxu0 0.0
    %712 = vmatpush1.msra.mxu0 %v681
    %713 = vmatprep.subr.mxu0 0.0
    %714 = vmatpush1.msra.mxu0 %v680
    %715 = vmatprep.subr.mxu0 0.0
    %716 = vmatpush1.msra.mxu0 %v679
    %717 = vmatprep.subr.mxu0 0.0
    %718 = vmatpush1.msra.mxu0 %v678
    %719 = vmatprep.subr.mxu0 0.0
    %720 = vmatpush2.msra.mxu0 0.0
    %721 = vmatprep.subr.mxu0 0.0
    %722 = vmatpush2.msra.mxu0 0.0
    %723 = vmatprep.subr.mxu0 0.0
    %724 = vmatpush2.msra.mxu0 0.0
    %725 = vmatprep.subr.mxu0 0.0
    %726 = vmatpush2.msra.mxu0 0.0
    %727 = vmatprep.subr.mxu0 0.0
    %728 = vmatpush2.msra.mxu0 0.0
    %729 = vmatprep.subr.mxu0 0.0
    %730 = vmatpush2.msra.mxu0 0.0
    %731 = vmatprep.subr.mxu0 0.0
    %732 = vmatpush2.msra.mxu0 0.0
    %733 = vmatprep.subr.mxu0 0.0
    %734 = vmatpush2.msra.mxu0 0.0
    %735 = vmatprep.subr.mxu0 0.0
    %736 = vmatpush2.msra.mxu0 0.0
    %737 = vmatprep.subr.mxu0 0.0
    %738 = vmatpush2.msra.mxu0 0.0
    %739 = vmatprep.subr.mxu0 0.0
    %740 = vmatpush2.msra.mxu0 0.0
    %741 = vmatprep.subr.mxu0 0.0
    %742 = vmatpush2.msra.mxu0 0.0
    %743 = vmatprep.subr.mxu0 0.0
    %744 = vmatpush2.msra.mxu0 0.0
    %745 = vmatprep.subr.mxu0 0.0
    %746 = vmatpush2.msra.mxu0 0.0
    %747 = vmatprep.subr.mxu0 0.0
    %748 = vmatpush2.msra.mxu0 0.0
    %749 = vmatprep.subr.mxu0 0.0
    %750 = vmatpush2.msra.mxu0 0.0
    %751 = vmatprep.mubr.f32.mxu0 0.0
    %752 = vmatmul.mubr.f32.gmra.mxu0 %v78
    %v753 = vpop.f32.mrf.mxu0
    %v754 = vadd.f32 0.0, %v753
    %v755 = vpop.f32.mrf.mxu0
    %756 = vmatprep.mubr.f32.mxu0 0.0
    %757 = vmatmul.mubr.f32.gmra.mxu0 %v81
    %v758 = vpop.f32.mrf.mxu0
    %v759 = vadd.f32 0.0, %v758
    %v760 = vpop.f32.mrf.mxu0
    %761 = vmatprep.mubr.f32.mxu0 0.0
    %762 = vmatmul.mubr.f32.gmra.mxu0 %v84
    %v763 = vpop.f32.mrf.mxu0
    %v764 = vadd.f32 0.0, %v763
    %v765 = vpop.f32.mrf.mxu0
    %766 = vmatprep.mubr.f32.mxu0 0.0
    %767 = vmatmul.mubr.f32.gmra.mxu0 %v87
    %v768 = vpop.f32.mrf.mxu0
    %v769 = vadd.f32 0.0, %v768
    %v770 = vpop.f32.mrf.mxu0
    %771 = vdwg.mxu0
    %v772 = vadd.f32 %v683, %v754
    %v773 = vadd.f32 %v684, %v759
    %v774 = vadd.f32 %v685, %v764
    %v775 = vadd.f32 %v686, %v769
    %v776 = vtanh.pop %v772
    %v777 = vtanh.pop %v773
    %v778 = vtanh.pop %v774
    %v779 = vtanh.pop %v775
    %s780 = sadd.s32 %s62, 5
    %v781 = vstv %s780
    %vm782 = vcmp.lt.s32.totalorder %v781, %v63
    %v783 = vsel %vm782, 1, 0
    %v784 = vlaneseq
    %v785 = vshrl.u32 %v784, 7
    %v786 = vsub.s32 0, %v785
    %v787 = vrot.slane %v783, %v786
    %vm788 = vcmp.eq.s32.totalorder %v787, 1
    %v789 = vsel %vm788, %v776, -1.0
    %v790 = vsel %vm788, %v777, -1.0
    %v791 = vsel %vm788, %v778, -1.0
    %v792 = vsel %vm788, %v779, -1.0
    %s793 = scalar_lea.vmem [#allocation9], 160
    %794 = vst [vmem:[%s793] sm:$0xff] %v789
    %795 = vst [vmem:[%s793 + $0x8] sm:$0xff] %v790
    %796 = vst [vmem:[%s793 + $0x10] sm:$0xff] %v791
    %797 = vst [vmem:[%s793 + $0x18] sm:$0xff] %v792
    %v798 = vsel %vm788, %v776, %v678
    %v799 = vsel %vm788, %v777, %v679
    %v800 = vsel %vm788, %v778, %v680
    %v801 = vsel %vm788, %v779, %v681
    %s802 = scalar_lea.vmem [#allocation6], 192
    %v803 = vld [vmem:[%s802] sm:$0xff]
    %v804 = vld [vmem:[%s802 + $0x8] sm:$0xff]
    %v805 = vld [vmem:[%s802 + $0x10] sm:$0xff]
    %v806 = vld [vmem:[%s802 + $0x18] sm:$0xff]
    %807 = vmatprep.subr.mxu0 0.0
    %808 = vmatpush1.msra.mxu0 0.0
    %809 = vmatprep.subr.mxu0 0.0
    %810 = vmatpush1.msra.mxu0 0.0
    %811 = vmatprep.subr.mxu0 0.0
    %812 = vmatpush1.msra.mxu0 0.0
    %813 = vmatprep.subr.mxu0 0.0
    %814 = vmatpush1.msra.mxu0 0.0
    %815 = vmatprep.subr.mxu0 0.0
    %816 = vmatpush1.msra.mxu0 0.0
    %817 = vmatprep.subr.mxu0 0.0
    %818 = vmatpush1.msra.mxu0 0.0
    %819 = vmatprep.subr.mxu0 0.0
    %820 = vmatpush1.msra.mxu0 0.0
    %821 = vmatprep.subr.mxu0 0.0
    %822 = vmatpush1.msra.mxu0 0.0
    %823 = vmatprep.subr.mxu0 0.0
    %824 = vmatpush1.msra.mxu0 0.0
    %825 = vmatprep.subr.mxu0 0.0
    %826 = vmatpush1.msra.mxu0 0.0
    %827 = vmatprep.subr.mxu0 0.0
    %828 = vmatpush1.msra.mxu0 0.0
    %829 = vmatprep.subr.mxu0 0.0
    %830 = vmatpush1.msra.mxu0 0.0
    %831 = vmatprep.subr.mxu0 0.0
    %832 = vmatpush1.msra.mxu0 %v801
    %833 = vmatprep.subr.mxu0 0.0
    %834 = vmatpush1.msra.mxu0 %v800
    %835 = vmatprep.subr.mxu0 0.0
    %836 = vmatpush1.msra.mxu0 %v799
    %837 = vmatprep.subr.mxu0 0.0
    %838 = vmatpush1.msra.mxu0 %v798
    %839 = vmatprep.subr.mxu0 0.0
    %840 = vmatpush2.msra.mxu0 0.0
    %841 = vmatprep.subr.mxu0 0.0
    %842 = vmatpush2.msra.mxu0 0.0
    %843 = vmatprep.subr.mxu0 0.0
    %844 = vmatpush2.msra.mxu0 0.0
    %845 = vmatprep.subr.mxu0 0.0
    %846 = vmatpush2.msra.mxu0 0.0
    %847 = vmatprep.subr.mxu0 0.0
    %848 = vmatpush2.msra.mxu0 0.0
    %849 = vmatprep.subr.mxu0 0.0
    %850 = vmatpush2.msra.mxu0 0.0
    %851 = vmatprep.subr.mxu0 0.0
    %852 = vmatpush2.msra.mxu0 0.0
    %853 = vmatprep.subr.mxu0 0.0
    %854 = vmatpush2.msra.mxu0 0.0
    %855 = vmatprep.subr.mxu0 0.0
    %856 = vmatpush2.msra.mxu0 0.0
    %857 = vmatprep.subr.mxu0 0.0
    %858 = vmatpush2.msra.mxu0 0.0
    %859 = vmatprep.subr.mxu0 0.0
    %860 = vmatpush2.msra.mxu0 0.0
    %861 = vmatprep.subr.mxu0 0.0
    %862 = vmatpush2.msra.mxu0 0.0
    %863 = vmatprep.subr.mxu0 0.0
    %864 = vmatpush2.msra.mxu0 0.0
    %865 = vmatprep.subr.mxu0 0.0
    %866 = vmatpush2.msra.mxu0 0.0
    %867 = vmatprep.subr.mxu0 0.0
    %868 = vmatpush2.msra.mxu0 0.0
    %869 = vmatprep.subr.mxu0 0.0
    %870 = vmatpush2.msra.mxu0 0.0
    %871 = vmatprep.mubr.f32.mxu0 0.0
    %872 = vmatmul.mubr.f32.gmra.mxu0 %v78
    %v873 = vpop.f32.mrf.mxu0
    %v874 = vadd.f32 0.0, %v873
    %v875 = vpop.f32.mrf.mxu0
    %876 = vmatprep.mubr.f32.mxu0 0.0
    %877 = vmatmul.mubr.f32.gmra.mxu0 %v81
    %v878 = vpop.f32.mrf.mxu0
    %v879 = vadd.f32 0.0, %v878
    %v880 = vpop.f32.mrf.mxu0
    %881 = vmatprep.mubr.f32.mxu0 0.0
    %882 = vmatmul.mubr.f32.gmra.mxu0 %v84
    %v883 = vpop.f32.mrf.mxu0
    %v884 = vadd.f32 0.0, %v883
    %v885 = vpop.f32.mrf.mxu0
    %886 = vmatprep.mubr.f32.mxu0 0.0
    %887 = vmatmul.mubr.f32.gmra.mxu0 %v87
    %v888 = vpop.f32.mrf.mxu0
    %v889 = vadd.f32 0.0, %v888
    %v890 = vpop.f32.mrf.mxu0
    %891 = vdwg.mxu0
    %v892 = vadd.f32 %v803, %v874
    %v893 = vadd.f32 %v804, %v879
    %v894 = vadd.f32 %v805, %v884
    %v895 = vadd.f32 %v806, %v889
    %v896 = vtanh.pop %v892
    %v897 = vtanh.pop %v893
    %v898 = vtanh.pop %v894
    %v899 = vtanh.pop %v895
    %s900 = sadd.s32 %s62, 6
    %v901 = vstv %s900
    %vm902 = vcmp.lt.s32.totalorder %v901, %v63
    %v903 = vsel %vm902, 1, 0
    %v904 = vlaneseq
    %v905 = vshrl.u32 %v904, 7
    %v906 = vsub.s32 0, %v905
    %v907 = vrot.slane %v903, %v906
    %vm908 = vcmp.eq.s32.totalorder %v907, 1
    %v909 = vsel %vm908, %v896, -1.0
    %v910 = vsel %vm908, %v897, -1.0
    %v911 = vsel %vm908, %v898, -1.0
    %v912 = vsel %vm908, %v899, -1.0
    %s913 = scalar_lea.vmem [#allocation9], 192
    %914 = vst [vmem:[%s913] sm:$0xff] %v909
    %915 = vst [vmem:[%s913 + $0x8] sm:$0xff] %v910
    %916 = vst [vmem:[%s913 + $0x10] sm:$0xff] %v911
    %917 = vst [vmem:[%s913 + $0x18] sm:$0xff] %v912
    %v918 = vsel %vm908, %v896, %v798
    %v919 = vsel %vm908, %v897, %v799
    %v920 = vsel %vm908, %v898, %v800
    %v921 = vsel %vm908, %v899, %v801
    %s922 = scalar_lea.vmem [#allocation6], 224
    %v923 = vld [vmem:[%s922] sm:$0xff]
    %v924 = vld [vmem:[%s922 + $0x8] sm:$0xff]
    %v925 = vld [vmem:[%s922 + $0x10] sm:$0xff]
    %v926 = vld [vmem:[%s922 + $0x18] sm:$0xff]
    %927 = vmatprep.subr.mxu0 0.0
    %928 = vmatpush1.msra.mxu0 0.0
    %929 = vmatprep.subr.mxu0 0.0
    %930 = vmatpush1.msra.mxu0 0.0
    %931 = vmatprep.subr.mxu0 0.0
    %932 = vmatpush1.msra.mxu0 0.0
    %933 = vmatprep.subr.mxu0 0.0
    %934 = vmatpush1.msra.mxu0 0.0
    %935 = vmatprep.subr.mxu0 0.0
    %936 = vmatpush1.msra.mxu0 0.0
    %937 = vmatprep.subr.mxu0 0.0
    %938 = vmatpush1.msra.mxu0 0.0
    %939 = vmatprep.subr.mxu0 0.0
    %940 = vmatpush1.msra.mxu0 0.0
    %941 = vmatprep.subr.mxu0 0.0
    %942 = vmatpush1.msra.mxu0 0.0
    %943 = vmatprep.subr.mxu0 0.0
    %944 = vmatpush1.msra.mxu0 0.0
    %945 = vmatprep.subr.mxu0 0.0
    %946 = vmatpush1.msra.mxu0 0.0
    %947 = vmatprep.subr.mxu0 0.0
    %948 = vmatpush1.msra.mxu0 0.0
    %949 = vmatprep.subr.mxu0 0.0
    %950 = vmatpush1.msra.mxu0 0.0
    %951 = vmatprep.subr.mxu0 0.0
    %952 = vmatpush1.msra.mxu0 %v921
    %953 = vmatprep.subr.mxu0 0.0
    %954 = vmatpush1.msra.mxu0 %v920
    %955 = vmatprep.subr.mxu0 0.0
    %956 = vmatpush1.msra.mxu0 %v919
    %957 = vmatprep.subr.mxu0 0.0
    %958 = vmatpush1.msra.mxu0 %v918
    %959 = vmatprep.subr.mxu0 0.0
    %960 = vmatpush2.msra.mxu0 0.0
    %961 = vmatprep.subr.mxu0 0.0
    %962 = vmatpush2.msra.mxu0 0.0
    %963 = vmatprep.subr.mxu0 0.0
    %964 = vmatpush2.msra.mxu0 0.0
    %965 = vmatprep.subr.mxu0 0.0
    %966 = vmatpush2.msra.mxu0 0.0
    %967 = vmatprep.subr.mxu0 0.0
    %968 = vmatpush2.msra.mxu0 0.0
    %969 = vmatprep.subr.mxu0 0.0
    %970 = vmatpush2.msra.mxu0 0.0
    %971 = vmatprep.subr.mxu0 0.0
    %972 = vmatpush2.msra.mxu0 0.0
    %973 = vmatprep.subr.mxu0 0.0
    %974 = vmatpush2.msra.mxu0 0.0
    %975 = vmatprep.subr.mxu0 0.0
    %976 = vmatpush2.msra.mxu0 0.0
    %977 = vmatprep.subr.mxu0 0.0
    %978 = vmatpush2.msra.mxu0 0.0
    %979 = vmatprep.subr.mxu0 0.0
    %980 = vmatpush2.msra.mxu0 0.0
    %981 = vmatprep.subr.mxu0 0.0
    %982 = vmatpush2.msra.mxu0 0.0
    %983 = vmatprep.subr.mxu0 0.0
    %984 = vmatpush2.msra.mxu0 0.0
    %985 = vmatprep.subr.mxu0 0.0
    %986 = vmatpush2.msra.mxu0 0.0
    %987 = vmatprep.subr.mxu0 0.0
    %988 = vmatpush2.msra.mxu0 0.0
    %989 = vmatprep.subr.mxu0 0.0
    %990 = vmatpush2.msra.mxu0 0.0
    %991 = vmatprep.mubr.f32.mxu0 0.0
    %992 = vmatmul.mubr.f32.gmra.mxu0 %v78
    %v993 = vpop.f32.mrf.mxu0
    %v994 = vadd.f32 0.0, %v993
    %v995 = vpop.f32.mrf.mxu0
    %996 = vmatprep.mubr.f32.mxu0 0.0
    %997 = vmatmul.mubr.f32.gmra.mxu0 %v81
    %v998 = vpop.f32.mrf.mxu0
    %v999 = vadd.f32 0.0, %v998
    %v1000 = vpop.f32.mrf.mxu0
    %1001 = vmatprep.mubr.f32.mxu0 0.0
    %1002 = vmatmul.mubr.f32.gmra.mxu0 %v84
    %v1003 = vpop.f32.mrf.mxu0
    %v1004 = vadd.f32 0.0, %v1003
    %v1005 = vpop.f32.mrf.mxu0
    %1006 = vmatprep.mubr.f32.mxu0 0.0
    %1007 = vmatmul.mubr.f32.gmra.mxu0 %v87
    %v1008 = vpop.f32.mrf.mxu0
    %v1009 = vadd.f32 0.0, %v1008
    %v1010 = vpop.f32.mrf.mxu0
    %1011 = vdwg.mxu0
    %v1012 = vadd.f32 %v923, %v994
    %v1013 = vadd.f32 %v924, %v999
    %v1014 = vadd.f32 %v925, %v1004
    %v1015 = vadd.f32 %v926, %v1009
    %v1016 = vtanh.pop %v1012
    %v1017 = vtanh.pop %v1013
    %v1018 = vtanh.pop %v1014
    %v1019 = vtanh.pop %v1015
    %s1020 = sadd.s32 %s62, 7
    %v1021 = vstv %s1020
    %vm1022 = vcmp.lt.s32.totalorder %v1021, %v63
    %v1023 = vsel %vm1022, 1, 0
    %v1024 = vlaneseq
    %v1025 = vshrl.u32 %v1024, 7
    %v1026 = vsub.s32 0, %v1025
    %v1027 = vrot.slane %v1023, %v1026
    %vm1028 = vcmp.eq.s32.totalorder %v1027, 1
    %v1029 = vsel %vm1028, %v1016, -1.0
    %v1030 = vsel %vm1028, %v1017, -1.0
    %v1031 = vsel %vm1028, %v1018, -1.0
    %v1032 = vsel %vm1028, %v1019, -1.0
    %s1033 = scalar_lea.vmem [#allocation9], 224
    %1034 = vst [vmem:[%s1033] sm:$0xff] %v1029
    %1035 = vst [vmem:[%s1033 + $0x8] sm:$0xff] %v1030
    %1036 = vst [vmem:[%s1033 + $0x10] sm:$0xff] %v1031
    %1037 = vst [vmem:[%s1033 + $0x18] sm:$0xff] %v1032
    %v1038 = vsel %vm1028, %v1016, %v918
    %v1039 = vsel %vm1028, %v1017, %v919
    %v1040 = vsel %vm1028, %v1018, %v920
    %v1041 = vsel %vm1028, %v1019, %v921
    %1042 = vst [vmem:[#allocation2] sm:$0xff] %v1038
    %1043 = vst [vmem:[#allocation2 + $0x8] sm:$0xff] %v1039
    %1044 = vst [vmem:[#allocation2 + $0x10] sm:$0xff] %v1040
    %1045 = vst [vmem:[#allocation2 + $0x18] sm:$0xff] %v1041
    // Predicated region
    $region30: #{tpu_custom_call.1} parent=1 // pred_check
      _
    $region31: #{tpu_custom_call.1} parent=1 // pred_check_branch
      %1047 = sbr.rel (0) target = $region33
    $region32: #{tpu_custom_call.1} parent=1 // pred_region
      %s1049 = ssub.s32 4096, 4096
      %1050 = vsyncadd [#allocation5], %s1049
      %s1051 = sshll.u32 [#allocation9], 4
      %s1052 = int_to_ptr.vmem [resolvable:$true] %s1051
      %1057 = dma.vmem_to_hbm [thread:$0]  %s1052, 4096, %s3, [#allocation5], 128, 128, 8
    $region33: #{tpu_custom_call.1} parent=1 // pred_fallthru
      _
    // Predicated region
    $region34: #{tpu_custom_call.1} parent=1 // pred_check
      _
    $region35: #{tpu_custom_call.1} parent=1 // pred_check_branch
      %1059 = sbr.rel (0) target = $region37
    $region36: #{tpu_custom_call.1} parent=1 // pred_region
      %1060 = dma.done [#allocation5], 4096
    $region37: #{tpu_custom_call.1} parent=1 // pred_fallthru
      _
    %1061 = vsyncpa [#allocation4], 1
    %1062 = vsyncpa [#allocation7], 1
    %1063 = vsyncpa [#allocation5], 1

</llo_original>
